<compile_context>
chip_gen: v5e
topology: v5e:2x2
jax: 0.10.0
libtpu: 0.0.40
codegen_flags: <defaults>
</compile_context>

<pallas_src>
import functools

import jax
import jax.numpy as jnp
from jax.experimental import pallas as pl
from jax.experimental.pallas import tpu as pltpu


def _ce_kernel(labels_ref, preds_ref, loss_ref, *, ignore_label, n_pixels, tile_p):
    """Per-pixel cross entropy with ignore_index, reduction='none'.

    labels_ref: (1, 1, TILE_P) int32
    preds_ref : (1, C, TILE_P) float   (classes on sublanes, pixels on lanes)
    loss_ref  : (1, 1, TILE_P) float32
    """
    j = pl.program_id(1)                                 # pixel-tile index

    x = preds_ref[...].astype(jnp.float32)               # (1, C, TP)
    lbl = labels_ref[...]                                 # (1, 1, TP)

    # numerically stable log-sum-exp over the class (sublane) axis
    m = jnp.max(x, axis=1, keepdims=True)                 # (1, 1, TP)
    lse = m + jnp.log(jnp.sum(jnp.exp(x - m), axis=1, keepdims=True))

    # gather the logit at the label index via a one-hot compare+select+reduce
    # over the class axis (VPU/XLU work; no MXU, no dynamic gather needed)
    cls = jax.lax.broadcasted_iota(jnp.int32, x.shape, dimension=1)
    x_lbl = jnp.sum(jnp.where(cls == lbl, x, 0.0), axis=1, keepdims=True)

    loss = lse - x_lbl                                     # (1, 1, TP)

    # mask ignored labels and the out-of-range tail of the last pixel tile
    lane = jax.lax.broadcasted_iota(jnp.int32, lbl.shape, dimension=2)
    in_range = (j * tile_p + lane) < n_pixels
    valid = (lbl != ignore_label) & in_range
    loss_ref[...] = jnp.where(valid, loss, 0.0).astype(loss_ref.dtype)


def _per_pixel_ce(preds_bcp, labels_b1p, ignore_label, *,
                  tile_p_max=8192, vmem_budget_bytes=16 * 1024 * 1024):
    """Per-pixel CE over (B, C, P) logits / (B, 1, P) labels -> (B, 1, P) loss."""
    b, c, p = preds_bcp.shape

    # Largest lane-dense pixel tile that keeps double-buffered f32 blocks well
    # under the v7x VMEM budget (64 MiB physical / ~32 MiB scoped).
    per_pixel_bytes = (c + 2) * 4 * 2            # logits + label + loss, 2 buffers
    tile_p = min(tile_p_max,
                 max(128, (vmem_budget_bytes // per_pixel_bytes) // 128 * 128))
    if p <= tile_p:
        tile_p = p                                # full pixel axis (any size allowed)
    num_tiles = pl.cdiv(p, tile_p)

    kernel = functools.partial(_ce_kernel, ignore_label=ignore_label,
                               n_pixels=p, tile_p=tile_p)
    loss = pl.pallas_call(
        kernel,
        out_shape=jax.ShapeDtypeStruct((b, 1, p), jnp.float32),
        grid=(b, num_tiles),
        in_specs=[
            pl.BlockSpec((1, 1, tile_p), lambda i, j: (i, 0, j)),   # labels
            pl.BlockSpec((1, c, tile_p), lambda i, j: (i, 0, j)),   # logits
        ],
        out_specs=pl.BlockSpec((1, 1, tile_p), lambda i, j: (i, 0, j)),
        compiler_params=pltpu.CompilerParams(
            dimension_semantics=("parallel", "parallel")),
    )(labels_b1p, preds_bcp)
    return loss


def ohem_cross_entropy(preds, labels, *, ignore_label=-1, thresh=0.7):
    """Forward pass of OhemCrossEntropy (class_balancer=None).

    preds : (B, C, H, W) float
    labels: (B, H, W) int
    returns scalar float32 loss.
    """
    b, c, h, w = preds.shape
    p = h * w
    n = b * p

    # NCHW is kept as-is: (B, C, H, W) -> (B, C, P) is a free contiguous reshape.
    x = preds.reshape(b, c, p)
    lbl = labels.reshape(b, 1, p).astype(jnp.int32)

    loss = _per_pixel_ce(x, lbl, ignore_label).reshape(n)   # 0 at ignored pixels

    thresh_val = -jnp.log(jnp.float32(thresh))
    valid = labels.reshape(n) != ignore_label
    n_min = jnp.sum(valid).astype(jnp.int32) // 5

    # branch 1: hard pixels (loss > thresh). Ignored pixels have loss 0 <= thresh.
    hard_mask = loss > thresh_val
    n_hard = jnp.sum(hard_mask).astype(jnp.int32)
    sum_hard = jnp.sum(jnp.where(hard_mask, loss, 0.0))
    # safe division (torch would give NaN only when every pixel is ignored)
    mean_hard = sum_hard / jnp.maximum(n_hard, 1).astype(jnp.float32)

    # branch 2: top-k with data-dependent k = n_min.
    # TODO(synk): dynamic-k topk has no fixed-shape Pallas equivalent; use a
    # fixed-size lax.top_k bounded by N//5 and mask the first n_min entries
    # (much cheaper than a full O(N log N) sort of the loss vector).
    k_max = max(n // 5, 1)
    topk_vals, _ = jax.lax.top_k(loss, k_max)               # sorted descending
    topk_mask = jnp.arange(k_max) < n_min
    mean_topk = jnp.sum(jnp.where(topk_mask, topk_vals, 0.0)) / jnp.maximum(
        n_min, 1).astype(jnp.float32)

    # torch: if loss_hard.numel() < n_min -> mean(topk(n_min)), else mean(loss_hard)
    return jnp.where(n_hard < n_min, mean_topk, mean_hard)


def _reference_per_pixel_ce(preds, labels, ignore_label):
    """Pure-JAX reference for the per-pixel CE (NCHW in, (N,) out)."""
    b, c, h, w = preds.shape
    x = jnp.transpose(preds, (0, 2, 3, 1)).reshape(-1, c).astype(jnp.float32)
    lbl = labels.reshape(-1)
    logp = jax.nn.log_softmax(x, axis=-1)
    safe_lbl = jnp.where(lbl == ignore_label, 0, lbl)
    ce = -jnp.take_along_axis(logp, safe_lbl[:, None], axis=-1)[:, 0]
    return jnp.where(lbl == ignore_label, 0.0, ce)


if __name__ == "__main__":
    key = jax.random.PRNGKey(0)
    k_pred, k_lbl = jax.random.split(key)

    B, C, H, W = 2, 4, 16, 16
    preds = jax.random.normal(k_pred, (B, C, H, W), dtype=jnp.float32)
    # labels in [-1, C): include some ignore_label (-1) pixels
    labels = jax.random.randint(k_lbl, (B, H, W), minval=-1, maxval=C, dtype=jnp.int32)

    # sanity-check the Pallas per-pixel CE against a pure-JAX reference
    lbl3 = labels.reshape(B, 1, H * W).astype(jnp.int32)
    ce_kernel = jax.jit(functools.partial(_per_pixel_ce, ignore_label=-1))(
        preds.reshape(B, C, H * W), lbl3).reshape(-1)
    ce_ref = _reference_per_pixel_ce(preds, labels, -1)
    assert jnp.allclose(ce_kernel, ce_ref, atol=1e-4, rtol=1e-4)

    loss = jax.jit(functools.partial(ohem_cross_entropy,
                                     ignore_label=-1, thresh=0.7))(preds, labels)
    jax.block_until_ready(loss)
    assert loss.shape == () and jnp.isfinite(loss)
    print("KERNEL_OK")
</pallas_src>

<mosaic_0001>
module attributes {stable_mosaic.version = 11 : i64} {
  func.func @_ce_kernel(%arg0: i32, %arg1: i32, %arg2: memref<1x1x256xi32, #tpu.memory_space<vmem>>, %arg3: memref<1x4x256xf32, #tpu.memory_space<vmem>>, %arg4: memref<1x1x256xf32, #tpu.memory_space<vmem>>) attributes {dimension_semantics = [#tpu.dimension_semantics<parallel>, #tpu.dimension_semantics<parallel>], iteration_bounds = array<i64: 2, 1>, scalar_prefetch = 0 : i64, scratch_operands = 0 : i64, tpu.core_type = #tpu.core_type<tc>, window_params = [{transform_indices = @transform_0, window_bounds = array<i64: 1, 1, 256>}, {transform_indices = @transform_1, window_bounds = array<i64: 1, 4, 256>}, {transform_indices = @transform_2, window_bounds = array<i64: 1, 1, 256>}]} {
    %c0 = arith.constant 0 : index
    %c0_0 = arith.constant 0 : index
    %c0_1 = arith.constant 0 : index
    %0 = vector.load %arg3[%c0, %c0_0, %c0_1] : memref<1x4x256xf32, #tpu.memory_space<vmem>>, vector<1x4x256xf32>
    %c0_2 = arith.constant 0 : index
    %c0_3 = arith.constant 0 : index
    %c0_4 = arith.constant 0 : index
    %1 = vector.load %arg2[%c0_2, %c0_3, %c0_4] : memref<1x1x256xi32, #tpu.memory_space<vmem>>, vector<1x1x256xi32>
    %cst = arith.constant dense<0xFF800000> : vector<1x256xf32>
    %2 = vector.multi_reduction <maximumf>, %0, %cst [1] : vector<1x4x256xf32> to vector<1x256xf32>
    %3 = vector.shape_cast %2 : vector<1x256xf32> to vector<1x1x256xf32>
    %4 = vector.broadcast %3 : vector<1x1x256xf32> to vector<1x4x256xf32>
    %5 = arith.subf %0, %4 : vector<1x4x256xf32>
    %6 = math.exp %5 : vector<1x4x256xf32>
    %cst_5 = arith.constant dense<0.000000e+00> : vector<1x256xf32>
    %7 = vector.multi_reduction <add>, %6, %cst_5 [1] : vector<1x4x256xf32> to vector<1x256xf32>
    %8 = vector.shape_cast %7 : vector<1x256xf32> to vector<1x1x256xf32>
    %9 = math.log %8 : vector<1x1x256xf32>
    %10 = arith.addf %3, %9 : vector<1x1x256xf32>
    %11 = tpu.iota {dimensions = array<i32: 1>} : vector<1x4x256xi32>
    %12 = vector.broadcast %1 : vector<1x1x256xi32> to vector<1x4x256xi32>
    %13 = arith.cmpi eq, %11, %12 : vector<1x4x256xi32>
    %cst_6 = arith.constant 0.000000e+00 : f32
    %14 = vector.broadcast %cst_6 : f32 to vector<1x4x256xf32>
    %15 = arith.select %13, %0, %14 : vector<1x4x256xi1>, vector<1x4x256xf32>
    %cst_7 = arith.constant dense<0.000000e+00> : vector<1x256xf32>
    %16 = vector.multi_reduction <add>, %15, %cst_7 [1] : vector<1x4x256xf32> to vector<1x256xf32>
    %17 = vector.shape_cast %16 : vector<1x256xf32> to vector<1x1x256xf32>
    %18 = arith.subf %10, %17 : vector<1x1x256xf32>
    %19 = tpu.iota {dimensions = array<i32: 2>} : vector<1x1x256xi32>
    %c256_i32 = arith.constant 256 : i32
    %20 = arith.muli %arg1, %c256_i32 : i32
    %21 = vector.broadcast %20 : i32 to vector<1x1x256xi32>
    %22 = arith.addi %21, %19 : vector<1x1x256xi32>
    %c256_i32_8 = arith.constant 256 : i32
    %23 = vector.broadcast %c256_i32_8 : i32 to vector<1x1x256xi32>
    %24 = arith.cmpi slt, %22, %23 : vector<1x1x256xi32>
    %c-1_i32 = arith.constant -1 : i32
    %25 = vector.broadcast %c-1_i32 : i32 to vector<1x1x256xi32>
    %26 = arith.cmpi ne, %1, %25 : vector<1x1x256xi32>
    %27 = arith.andi %26, %24 : vector<1x1x256xi1>
    %cst_9 = arith.constant 0.000000e+00 : f32
    %28 = vector.broadcast %cst_9 : f32 to vector<1x1x256xf32>
    %29 = arith.select %27, %18, %28 : vector<1x1x256xi1>, vector<1x1x256xf32>
    %c0_10 = arith.constant 0 : index
    %c0_11 = arith.constant 0 : index
    %c0_12 = arith.constant 0 : index
    %30 = vector.load %arg4[%c0_10, %c0_11, %c0_12] : memref<1x1x256xf32, #tpu.memory_space<vmem>>, vector<1x1x256xf32>
    tpu.vector_store %arg4[%c0_10, %c0_11, %c0_12], %29 {strides = array<i32>} : memref<1x1x256xf32, #tpu.memory_space<vmem>>, vector<1x1x256xf32>,
    return
  }
  func.func @transform_0(%arg0: i32, %arg1: i32) -> (i32, i32, i32) {
    %c0_i32 = arith.constant 0 : i32
    %c0_i32_0 = arith.constant 0 : i32
    return %arg0, %c0_i32, %arg1 : i32, i32, i32
  }
  func.func @transform_1(%arg0: i32, %arg1: i32) -> (i32, i32, i32) {
    %c0_i32 = arith.constant 0 : i32
    %c0_i32_0 = arith.constant 0 : i32
    return %arg0, %c0_i32, %arg1 : i32, i32, i32
  }
  func.func @transform_2(%arg0: i32, %arg1: i32) -> (i32, i32, i32) {
    %c0_i32 = arith.constant 0 : i32
    %c0_i32_0 = arith.constant 0 : i32
    return %arg0, %c0_i32, %arg1 : i32, i32, i32
  }
}

</mosaic_0001>

<llo_original>
// kernel: _per_pixel_ce.1
$region0: #{_per_pixel_ce.1}
  #allocation0 [shape = 'u32[]', space=smem, size = 0x4, offset = 0x4, fixed_abs, tag = 'smem constant byte address 0x4 - core index']
  #allocation1 [shape = 'u32[72,128]{1,0:T(1,128)}', space=vmem, size = 0x9000, scoped, tag = 'internal scratch']
  %s0 = inlined_call_operand.hbm [shape: s32[2,1,256], index: 0, kind: input, shape index: {}]
  %s1 = inlined_call_operand.hbm [shape: f32[2,4,256], index: 1, kind: input, shape index: {}]
  %s2 = inlined_call_operand.hbm [shape: f32[2,1,256], index: 2, kind: output, shape index: {}]
  %s3 = sld [smem:[#allocation0]]
  $region49: #{_per_pixel_ce.1} parent=0
    _
  %s5 = ssub.s32 1, %s3
  %s6 = scalar_select 0, %s5, %s3
  $region1: #{_per_pixel_ce.1} parent=0
    #allocation2 [shape = 'u8[2048]{0}', space=vmem, size = 0x800, scoped, tag = 'input window, operand 0']
    #allocation3 [shape = 's32[2]{0}', space=sflag, size = 0x8, scoped, tag = 'scoped memory for _per_pixel_ce.1']
    #allocation4 [shape = 's32[2]{0}', space=sflag, size = 0x8, scoped, tag = 'scoped memory for _per_pixel_ce.1']
    #allocation5 [shape = 'u8[8192]{0}', space=vmem, size = 0x2000, scoped, tag = 'input window, operand 1']
    #allocation6 [shape = 's32[2]{0}', space=sflag, size = 0x8, scoped, tag = 'scoped memory for _per_pixel_ce.1']
    #allocation7 [shape = 'u8[2048]{0}', space=vmem, size = 0x800, scoped, tag = 'output window, operand 0']
    %7 = vsyncpa [#allocation3], 0
    %s8 = scalar_lea.sflag [#allocation3], 1
    %9 = vsyncpa %s8, 0
    %10 = vsyncpa [#allocation6], 0
    %s11 = scalar_lea.sflag [#allocation6], 1
    %12 = vsyncpa %s11, 0
    %13 = vsyncpa [#allocation4], 0
    %s14 = scalar_lea.sflag [#allocation4], 1
    %15 = vsyncpa %s14, 0
    loop: start=0, step=1, limit=4
    $region2: #{_per_pixel_ce.1} parent=1 // loop_pre_header
      _
    $region3: #{_per_pixel_ce.1} parent=1 // loop_header
      %s17 = sphi 0, %s21
      %p18 = scmp.ge.s32.totalorder %s17, 4
      %s24 = sphi 0, %s36
      %s25 = sphi 0, %s32
      %s26 = sphi 0, %s24
      %s27 = sphi 0, %s25
      %s28 = sphi 0, %s26
      %s29 = sphi 0, %s27
      %s41 = sphi 0, %s43
      %s44 = sphi 0, %s41
      %s45 = sphi 0, %s44
      %s61 = sphi 0, %s45
      %s69 = sphi 0, %s71
      %s72 = sphi 0, %s69
      %s73 = sphi 0, %s72
      %s89 = sphi 0, %s73
      %s97 = sphi 0, %s99
      %s100 = sphi 0, %s97
      %s101 = sphi 0, %s100
      %s117 = sphi 0, %s101
    $region4: #{_per_pixel_ce.1} parent=1 // loop_header_branch
      %20 = sbr.rel (%p18) target = $region8
    $region5: #{_per_pixel_ce.1} parent=1 // loop_body
      %s22 = ssub.s32 %s17, 1
      %s23 = ssub.s32 %s17, 2
      %s30 = sadd.s32 1, %s25
      %p31 = scmp.ge.s32.totalorder %s30, 1
      %s32 = scalar_select %p31, 0, %s30
      %s33 = sadd.s32 1, %s24
      %s34 = scalar_select %p31, %s33, %s24
      %p35 = scmp.ge.s32.totalorder %s34, 2
      %s36 = scalar_select %p35, 0, %s34
      %s37 = ssub.s32 %s24, %s36
      %s38 = ssub.s32 %s25, %s32
      %s39 = sor.u32 %s37, %s38
      %p40 = scmp.eq.s32.totalorder %s39, 0
      %s42 = sadd.s32 %s41, 1
      %s43 = scalar_select %p40, %s41, %s42
      %p46 = pneg %p40
      %p47 = scmp.eq.s32.totalorder %s17, 1
      %p48 = por %p46, %p47
      %p49 = scmp.ne.s32.totalorder %s41, %s44
      %p50 = scmp.eq.s32.totalorder %s17, 0
      %p51 = por %p49, %p50
      %p52 = scmp.ne.s32.totalorder %s41, %s44
      %p53 = scmp.eq.s32.totalorder %s22, 1
      %p54 = por %p52, %p53
      %p55 = scmp.ne.s32.totalorder %s44, %s45
      %p56 = scmp.eq.s32.totalorder %s22, 0
      %p57 = por %p55, %p56
      %p58 = scmp.ne.s32.totalorder %s44, %s45
      %p59 = scmp.eq.s32.totalorder %s23, 1
      %p60 = por %p58, %p59
      %p62 = scmp.ne.s32.totalorder %s45, %s61
      %p63 = scmp.eq.s32.totalorder %s23, 0
      %p64 = por %p62, %p63
      %s65 = ssub.s32 %s24, %s36
      %s66 = ssub.s32 %s25, %s32
      %s67 = sor.u32 %s65, %s66
      %p68 = scmp.eq.s32.totalorder %s67, 0
      %s70 = sadd.s32 %s69, 1
      %s71 = scalar_select %p68, %s69, %s70
      %p74 = pneg %p68
      %p75 = scmp.eq.s32.totalorder %s17, 1
      %p76 = por %p74, %p75
      %p77 = scmp.ne.s32.totalorder %s69, %s72
      %p78 = scmp.eq.s32.totalorder %s17, 0
      %p79 = por %p77, %p78
      %p80 = scmp.ne.s32.totalorder %s69, %s72
      %p81 = scmp.eq.s32.totalorder %s22, 1
      %p82 = por %p80, %p81
      %p83 = scmp.ne.s32.totalorder %s72, %s73
      %p84 = scmp.eq.s32.totalorder %s22, 0
      %p85 = por %p83, %p84
      %p86 = scmp.ne.s32.totalorder %s72, %s73
      %p87 = scmp.eq.s32.totalorder %s23, 1
      %p88 = por %p86, %p87
      %p90 = scmp.ne.s32.totalorder %s73, %s89
      %p91 = scmp.eq.s32.totalorder %s23, 0
      %p92 = por %p90, %p91
      %s93 = ssub.s32 %s24, %s36
      %s94 = ssub.s32 %s25, %s32
      %s95 = sor.u32 %s93, %s94
      %p96 = scmp.eq.s32.totalorder %s95, 0
      %s98 = sadd.s32 %s97, 1
      %s99 = scalar_select %p96, %s97, %s98
      %p102 = pneg %p96
      %p103 = scmp.eq.s32.totalorder %s17, 1
      %p104 = por %p102, %p103
      %p105 = scmp.ne.s32.totalorder %s97, %s100
      %p106 = scmp.eq.s32.totalorder %s17, 0
      %p107 = por %p105, %p106
      %p108 = scmp.ne.s32.totalorder %s97, %s100
      %p109 = scmp.eq.s32.totalorder %s22, 1
      %p110 = por %p108, %p109
      %p111 = scmp.ne.s32.totalorder %s100, %s101
      %p112 = scmp.eq.s32.totalorder %s22, 0
      %p113 = por %p111, %p112
      %p114 = scmp.ne.s32.totalorder %s100, %s101
      %p115 = scmp.eq.s32.totalorder %s23, 1
      %p116 = por %p114, %p115
      %p118 = scmp.ne.s32.totalorder %s101, %s117
      %p119 = scmp.eq.s32.totalorder %s23, 0
      %p120 = por %p118, %p119
      %p121 = scmp.le.s32.totalorder 1, %s17
      %p122 = scmp.lt.s32.totalorder %s17, 3
      %p123 = pnand %p121, %p122
      %p124 = pneg %p123
      // Predicated region
      $region9: #{_per_pixel_ce.1} parent=5 // pred_check
        _
      $region10: #{_per_pixel_ce.1} parent=5 // pred_check_branch
        %126 = sbr.rel (%p123) target = $region12
      $region11: #{_per_pixel_ce.1} parent=5 // pred_region
        %s127 = ssub.s32 %s17, 1
      $region12: #{_per_pixel_ce.1} parent=5 // pred_fallthru
        _
      %p128 = scmp.lt.s32.totalorder %s17, 2
      // Predicated region
      $region13: #{_per_pixel_ce.1} parent=5 // pred_check
        %p129 = pneg %p128
      $region14: #{_per_pixel_ce.1} parent=5 // pred_check_branch
        %131 = sbr.rel (%p129) target = $region16
      $region15: #{_per_pixel_ce.1} parent=5 // pred_region
        // Predicated region
        $region17: #{_per_pixel_ce.1} parent=15 // pred_check
          %p132 = pneg %p51
        $region18: #{_per_pixel_ce.1} parent=15 // pred_check_branch
          %134 = sbr.rel (%p132) target = $region20
        $region19: #{_per_pixel_ce.1} parent=15 // pred_region
          %s135 = sand.u32 %s41, 1
          %s136 = scalar_lea.sflag [#allocation3], %s135
          %s137 = sand.u32 %s41, 1
          %s138 = smul.addr %s137, 2
          %s139 = scalar_lea.vmem [#allocation2], %s138
          %s140 = smul.u32 2, %s25
          %142 = vsyncadd %s136, 0
          %s143 = smul.addr %s24, 2
          %s144 = sadd.s32 %s140, %s143
          %s145 = scalar_lea.hbm %s0, %s144
          %s147 = sshll.u32 %s145, 4
          %s148 = int_to_ptr.hbm [resolvable:$true] %s147
          %s149 = sshll.u32 %s139, 4
          %s150 = int_to_ptr.vmem [resolvable:$true] %s149
          %152 = dma.hbm_to_vmem [thread:$0]  %s148, 32, %s150, %s136
        $region20: #{_per_pixel_ce.1} parent=15 // pred_fallthru
          _
        // Predicated region
        $region21: #{_per_pixel_ce.1} parent=15 // pred_check
          %p153 = pneg %p79
        $region22: #{_per_pixel_ce.1} parent=15 // pred_check_branch
          %155 = sbr.rel (%p153) target = $region24
        $region23: #{_per_pixel_ce.1} parent=15 // pred_region
          %s156 = sand.u32 %s69, 1
          %s157 = scalar_lea.sflag [#allocation6], %s156
          %s158 = sand.u32 %s69, 1
          %s159 = smul.addr %s158, 8
          %s160 = scalar_lea.vmem [#allocation5], %s159
          %s161 = smul.u32 2, %s25
          %163 = vsyncadd %s157, 0
          %s164 = smul.addr %s24, 2
          %s165 = sadd.s32 %s161, %s164
          %s166 = smul.addr %s165, 4
          %s167 = scalar_lea.hbm %s1, %s166
          %s169 = sshll.u32 %s167, 4
          %s170 = int_to_ptr.hbm [resolvable:$true] %s169
          %s171 = sshll.u32 %s160, 4
          %s172 = int_to_ptr.vmem [resolvable:$true] %s171
          %174 = dma.hbm_to_vmem [thread:$0]  %s170, 128, %s172, %s157
        $region24: #{_per_pixel_ce.1} parent=15 // pred_fallthru
          _
      $region16: #{_per_pixel_ce.1} parent=5 // pred_fallthru
        _
      %p175 = scmp.le.s32.totalorder 1, %s17
      %p176 = scmp.lt.s32.totalorder %s17, 3
      %p177 = pnand %p175, %p176
      %p178 = pneg %p177
      // Predicated region
      $region25: #{_per_pixel_ce.1} parent=5 // pred_check
        _
      $region26: #{_per_pixel_ce.1} parent=5 // pred_check_branch
        %180 = sbr.rel (%p177) target = $region28
      $region27: #{_per_pixel_ce.1} parent=5 // pred_region
        %s181 = ssub.s32 %s17, 1
        %s182 = sand.u32 %s44, 1
        %s183 = scalar_lea.sflag [#allocation3], %s182
        %s184 = sand.u32 %s44, 1
        %s185 = smul.addr %s184, 2
        %s186 = scalar_lea.vmem [#allocation2], %s185
        // Predicated region
        $region29: #{_per_pixel_ce.1} parent=27 // pred_check
          %p187 = pneg %p57
        $region30: #{_per_pixel_ce.1} parent=27 // pred_check_branch
          %189 = sbr.rel (%p187) target = $region32
        $region31: #{_per_pixel_ce.1} parent=27 // pred_region
          %191 = dma.done %s183, 32
        $region32: #{_per_pixel_ce.1} parent=27 // pred_fallthru
          _
        %s192 = sand.u32 %s72, 1
        %s193 = scalar_lea.sflag [#allocation6], %s192
        %s194 = sand.u32 %s72, 1
        %s195 = smul.addr %s194, 8
        %s196 = scalar_lea.vmem [#allocation5], %s195
        // Predicated region
        $region33: #{_per_pixel_ce.1} parent=27 // pred_check
          %p197 = pneg %p85
        $region34: #{_per_pixel_ce.1} parent=27 // pred_check_branch
          %199 = sbr.rel (%p197) target = $region36
        $region35: #{_per_pixel_ce.1} parent=27 // pred_region
          %201 = dma.done %s193, 128
        $region36: #{_per_pixel_ce.1} parent=27 // pred_fallthru
          _
        %s202 = sand.u32 %s44, 1
        %s203 = scalar_lea.sflag [#allocation3], %s202
        %s204 = sand.u32 %s44, 1
        %s205 = smul.addr %s204, 2
        %s206 = scalar_lea.vmem [#allocation2], %s205
        %p207 = pneg %p57
        %p208 = pneg %p54
        %s209 = sand.u32 %s72, 1
        %s210 = scalar_lea.sflag [#allocation6], %s209
        %s211 = sand.u32 %s72, 1
        %s212 = smul.addr %s211, 8
        %s213 = scalar_lea.vmem [#allocation5], %s212
        %p214 = pneg %p85
        %p215 = pneg %p82
        %p216 = pneg %p113
        %p217 = pneg %p110
        %s218 = sand.u32 %s100, 1
        %s219 = scalar_lea.sflag [#allocation4], %s218
        %s220 = sand.u32 %s100, 1
        %s221 = smul.addr %s220, 2
        %s222 = scalar_lea.vmem [#allocation7], %s221
        %s223 = smul.u32 2, %s27
        %s224 = smul.u32 2, %s27
        %s225 = smul.u32 2, %s27
        %v226 = vld [vmem:[%s196] sm:$0xff]
        %v227 = vld [vmem:[%s186] sm:$0x3]
        %229 = vst [vmem:[#allocation1] ss:$2 sm:$0xff] %v226
        %v230 = vld.sshfl [vmem:[#allocation1] sm:$0xff pattern:$0x75316420]
        %v231 = vld.sshfl [vmem:[#allocation1 + $0x8] sm:$0xff pattern:$0x75316420]
        %vm234 = vcmask 1043456
        %v235 = vsel %vm234, %v230, -inf
        %v236 = vrot.slane %v235, 4
        %v237 = vmax.f32 %v235, %v236
        %v238 = vrot.slane %v237, 2
        %v239 = vmax.f32 %v237, %v238
        %v240 = vrot.slane %v239, 1
        %v241 = vmax.f32 %v239, %v240
        %v242 = vsel %vm234, %v231, -inf
        %v243 = vrot.slane %v242, 4
        %v244 = vmax.f32 %v242, %v243
        %v245 = vrot.slane %v244, 2
        %v246 = vmax.f32 %v244, %v245
        %v247 = vrot.slane %v246, 1
        %v248 = vmax.f32 %v246, %v247
        %v251 = vrot.slane %v248, 4
        %v252 = vsel %vm234, %v241, %v251
        %v254 = vsub.f32 %v226, %v252
        %v255 = vmul.f32 %v254, 1.442695
        %v256 = vpow.pop %v255
        %258 = vst [vmem:[#allocation1] ss:$2 sm:$0xff] %v256
        %v259 = vld.sshfl [vmem:[#allocation1] sm:$0xff pattern:$0x75316420]
        %v260 = vld.sshfl [vmem:[#allocation1 + $0x8] sm:$0xff pattern:$0x75316420]
        %v263 = vsel %vm234, %v259, 0.0
        %v264 = vrot.slane %v263, 4
        %v265 = vadd.f32 %v263, %v264
        %v266 = vrot.slane %v265, 2
        %v267 = vadd.f32 %v265, %v266
        %v268 = vrot.slane %v267, 1
        %v269 = vadd.f32 %v267, %v268
        %v270 = vsel %vm234, %v260, 0.0
        %v271 = vrot.slane %v270, 4
        %v272 = vadd.f32 %v270, %v271
        %v273 = vrot.slane %v272, 2
        %v274 = vadd.f32 %v272, %v273
        %v275 = vrot.slane %v274, 1
        %v276 = vadd.f32 %v274, %v275
        %v277 = vlog2.pop %v269
        %v278 = vmul.f32 %v277, 0.6931472
        %v279 = vlog2.pop %v276
        %v280 = vmul.f32 %v279, 0.6931472
        %v281 = vadd.f32 %v241, %v278
        %v282 = vadd.f32 %v248, %v280
        %v283 = vlaneseq
        %v284 = vshrl.u32 %v283, 7
        %v285 = vperm.slane %v227, 0
        %v286 = vperm.slane %v227, 1
        %vm287 = vcmp.eq.s32.totalorder %v284, %v285
        %vm288 = vcmp.eq.s32.totalorder %v284, %v286
        %289 = vst [vmem:[#allocation1] ss:$2 sm:$0xff] %v226
        %v290 = vld.sshfl [vmem:[#allocation1] sm:$0xff pattern:$0x75316420]
        %v291 = vld.sshfl [vmem:[#allocation1 + $0x8] sm:$0xff pattern:$0x75316420]
        %v294 = vsel %vm287, %v290, 0.0
        %v295 = vsel %vm288, %v291, 0.0
        %v296 = vsel %vm234, %v294, 0.0
        %v297 = vrot.slane %v296, 4
        %v298 = vadd.f32 %v296, %v297
        %v299 = vrot.slane %v298, 2
        %v300 = vadd.f32 %v298, %v299
        %v301 = vrot.slane %v300, 1
        %v302 = vadd.f32 %v300, %v301
        %v303 = vsel %vm234, %v295, 0.0
        %v304 = vrot.slane %v303, 4
        %v305 = vadd.f32 %v303, %v304
        %v306 = vrot.slane %v305, 2
        %v307 = vadd.f32 %v305, %v306
        %v308 = vrot.slane %v307, 1
        %v309 = vadd.f32 %v307, %v308
        %v310 = vsub.f32 %v281, %v302
        %v311 = vsub.f32 %v282, %v309
        %v312 = vlaneseq
        %v313 = vand.u32 %v312, 127
        %v314 = vadd.s32 %v313, 128
        %s315 = smul.u32 %s27, 256
        %v316 = vstv %s315
        %v317 = vadd.s32 %v316, %v313
        %v318 = vadd.s32 %v316, %v314
        %vm319 = vcmp.lt.s32.totalorder %v317, 256
        %vm320 = vcmp.lt.s32.totalorder %v318, 256
        %vm321 = vcmp.ne.s32.totalorder %v227, 4294967295
        %v322 = vsel %vm319, 1, 0
        %v323 = vsel %vm320, 1, 0
        %v324 = vrot.slane %v323, 7
        %vm325 = vcmask 1040384
        %v326 = vsel %vm325, %v322, %v324
        %vm327 = vcmp.ne.s32.totalorder %v326, 0
        %vm328 = vmand %vm321, %vm327
        %v331 = vrot.slane %v311, 7
        %v332 = vsel %vm325, %v310, %v331
        %v334 = vsel %vm328, %v332, 0.0
        %v335 = vlaneseq
        %vm336 = vcmp.ge.s32.totalorder %v335, 0
        %vm337 = vcmp.lt.s32.totalorder %v335, 256
        %vm338 = vmand %vm336, %vm337
        %339 = vst.msk [vmem:[%s222] sm:$0x3] %vm338, %v334
        %s340 = sand.u32 %s100, 1
        %s341 = scalar_lea.sflag [#allocation4], %s340
        %s342 = sand.u32 %s100, 1
        %s343 = smul.addr %s342, 2
        %s344 = scalar_lea.vmem [#allocation7], %s343
        // Predicated region
        $region37: #{_per_pixel_ce.1} parent=27 // pred_check
          %p345 = pneg %p110
        $region38: #{_per_pixel_ce.1} parent=27 // pred_check_branch
          %347 = sbr.rel (%p345) target = $region40
        $region39: #{_per_pixel_ce.1} parent=27 // pred_region
          %s348 = smul.u32 2, %s27
          %350 = vsyncadd %s341, 0
          %s351 = smul.addr %s26, 2
          %s352 = sadd.s32 %s348, %s351
          %s353 = scalar_lea.hbm %s2, %s352
          %s355 = sshll.u32 %s344, 4
          %s356 = int_to_ptr.vmem [resolvable:$true] %s355
          %s357 = sshll.u32 %s353, 4
          %s358 = int_to_ptr.hbm [resolvable:$true] %s357
          %360 = dma.vmem_to_hbm [thread:$0]  %s356, 32, %s358, %s341
        $region40: #{_per_pixel_ce.1} parent=27 // pred_fallthru
          _
      $region28: #{_per_pixel_ce.1} parent=5 // pred_fallthru
        _
      %p361 = scmp.le.s32.totalorder 2, %s17
      // Predicated region
      $region41: #{_per_pixel_ce.1} parent=5 // pred_check
        %p362 = pneg %p361
      $region42: #{_per_pixel_ce.1} parent=5 // pred_check_branch
        %364 = sbr.rel (%p362) target = $region44
      $region43: #{_per_pixel_ce.1} parent=5 // pred_region
        %s365 = ssub.s32 %s17, 2
        // Predicated region
        $region45: #{_per_pixel_ce.1} parent=43 // pred_check
          %p366 = pneg %p116
        $region46: #{_per_pixel_ce.1} parent=43 // pred_check_branch
          %368 = sbr.rel (%p366) target = $region48
        $region47: #{_per_pixel_ce.1} parent=43 // pred_region
          %s369 = sand.u32 %s101, 1
          %s370 = scalar_lea.sflag [#allocation4], %s369
          %s371 = sand.u32 %s101, 1
          %s372 = smul.addr %s371, 2
          %s373 = scalar_lea.vmem [#allocation7], %s372
          %375 = dma.done %s370, 32
        $region48: #{_per_pixel_ce.1} parent=43 // pred_fallthru
          _
      $region44: #{_per_pixel_ce.1} parent=5 // pred_fallthru
        _
    $region6: #{_per_pixel_ce.1} parent=1 // loop_footer
      %s21 = sadd.s32 1, %s17
    $region7: #{_per_pixel_ce.1} parent=1 // loop_footer_branch
      %16 = sbr.rel target = $region3
    $region8: #{_per_pixel_ce.1} parent=1 // loop_exit
      _
    %376 = vsyncpa [#allocation3], 1
    %s377 = scalar_lea.sflag [#allocation3], 1
    %378 = vsyncpa %s377, 1
    %379 = vsyncpa [#allocation6], 1
    %s380 = scalar_lea.sflag [#allocation6], 1
    %381 = vsyncpa %s380, 1
    %382 = vsyncpa [#allocation4], 1
    %s383 = scalar_lea.sflag [#allocation4], 1
    %384 = vsyncpa %s383, 1

</llo_original>
